<compile_context>
chip_gen: v5e
topology: v5e:2x2
jax: 0.10.0
libtpu: 0.0.40
codegen_flags: <defaults>
</compile_context>

<pallas_src>
import math
import numpy as np
import jax
import jax.numpy as jnp
from jax.experimental import pallas as pl
from jax.experimental.pallas import tpu as pltpu

EMB_DIM = 32
HEADS = 8
HEAD_DIM = EMB_DIM // HEADS
EDGE_ATTR_DIM = 2

# ---- parameter-slab row layout (single packed (SLAB_ROWS, 3*EMB_DIM) f32) ----
D = EMB_DIM
ROW_WNODE = 0               # rows [0, D)    : w_node (D, 3D)   columns = [hk | v | hq]
ROW_MATS = D                # rows [D, 2D)   : bd_e (D,D) | w_out (D,D) | bd2 (D,H)
ROW_EXPAND = 2 * D          # rows [2D,2D+H) : expand (H, D)
ROW_BNODE = 2 * D + HEADS   # row 72         : b_node (1, 3D)
ROW_BIAS1 = ROW_BNODE + 1   # row 73         : b_edge | b1 | b2
ROW_BIAS2 = ROW_BNODE + 2   # row 74         : b_out | gamma | beta
ROW_WEDGE = ROW_BNODE + 3   # rows [75, 77)  : w_edge (edge_attr_dim, D)
SLAB_ROWS = 80              # padded to a multiple of 8 sublanes


# -----------------------------------------------------------------------------
# Pallas kernel: one MetaGNNLayer forward
#   kqv = Linear(x); per-edge attention MLP (per head, block-diag folded);
#   segment softmax over destination nodes; alpha * v; out_proj; scatter-add;
#   residual; BatchNorm1d (training-mode batch statistics).
# -----------------------------------------------------------------------------
def meta_gnn_layer_kernel(x_ref, src_oh_ref, dst_oh_ref, ea_ref, w_ref, out_ref):
    H = HEADS

    x = x_ref[...]                            # (N, D)  f32
    src_oh = src_oh_ref[...]                  # (Ne, N) bf16  one-hot of source (x_j)
    dst_oh = dst_oh_ref[...]                  # (Ne, N) bf16  one-hot of target (x_i)
    W = w_ref[...]                            # (SLAB_ROWS, 3D) f32 -- single load

    # static slices of the packed parameter slab
    w_node = W[ROW_WNODE:ROW_WNODE + D, :]                      # (D, 3D)
    bd_e = W[ROW_MATS:ROW_MATS + D, 0:D]                        # (D, D)
    w_out = W[ROW_MATS:ROW_MATS + D, D:2 * D]                   # (D, D)
    bd2 = W[ROW_MATS:ROW_MATS + D, 2 * D:2 * D + H]             # (D, H)
    expand = W[ROW_EXPAND:ROW_EXPAND + H, 0:D]                  # (H, D)
    b_node = W[ROW_BNODE:ROW_BNODE + 1, :]                      # (1, 3D)
    b_edge = W[ROW_BIAS1:ROW_BIAS1 + 1, 0:D]
    b1 = W[ROW_BIAS1:ROW_BIAS1 + 1, D:2 * D]
    b2 = W[ROW_BIAS1:ROW_BIAS1 + 1, 2 * D:2 * D + H]
    b_out = W[ROW_BIAS2:ROW_BIAS2 + 1, 0:D]
    gamma = W[ROW_BIAS2:ROW_BIAS2 + 1, D:2 * D]
    beta = W[ROW_BIAS2:ROW_BIAS2 + 1, 2 * D:3 * D]
    w_edge = W[ROW_WEDGE:ROW_WEDGE + EDGE_ATTR_DIM, 0:D]        # (2, D)

    # node-side: kqv projection + per-head attention pre-projections + scale,
    # all folded into one (N, D) x (D, 3D) matmul.  columns = [hk | v | hq]
    node_feat = jnp.dot(x, w_node, preferred_element_type=jnp.float32) + b_node
    nf = node_feat.astype(jnp.bfloat16)

    # per-edge gathers via bf16 one-hot MXU matmuls (f32 accumulation)
    e_j = jnp.dot(src_oh, nf[:, :2 * D], preferred_element_type=jnp.float32)   # (Ne, 2D) = [hk_e | v_e]
    hq_e = jnp.dot(dst_oh, nf[:, 2 * D:], preferred_element_type=jnp.float32)  # (Ne, D)
    hk_e = e_j[:, :D]
    v_e = e_j[:, D:]

    # edge attribute embedding (+ReLU), projected through per-head att weights
    ea_emb = jnp.maximum(
        jnp.dot(ea_ref[...], w_edge, preferred_element_type=jnp.float32) + b_edge, 0.0)
    he_e = jnp.dot(ea_emb, bd_e, preferred_element_type=jnp.float32)

    # att_mlp( cat([k, q, relu(edge)], -1) ), per head
    hidden = jnp.maximum(hk_e + hq_e + he_e + b1, 0.0)
    alpha = jnp.dot(hidden, bd2, preferred_element_type=jnp.float32) + b2       # (Ne, H)

    # segment softmax over destination node (per head).  Softmax is shift
    # invariant per segment -> one global per-head max shift is sufficient.
    gmax = jnp.max(alpha, axis=0, keepdims=True)                                # (1, H)
    ex = jnp.exp(alpha - gmax)                                                  # (Ne, H)
    # scatter-add of exp to destination segments: contract over edge axis (0,0)
    seg_sum = jax.lax.dot_general(
        dst_oh, ex.astype(jnp.bfloat16),
        dimension_numbers=(((0,), (0,)), ((), ())),
        preferred_element_type=jnp.float32)                                     # (N, H)
    gsum = jnp.dot(dst_oh, seg_sum.astype(jnp.bfloat16),
                   preferred_element_type=jnp.float32)                          # (Ne, H)
    alpha_n = ex * pl.reciprocal(gsum + 1e-16, approx=True)                     # matches PyG softmax

    # expand per-head alpha over head_dim lanes, weight values, out_proj
    alpha_full = jnp.dot(alpha_n, expand, preferred_element_type=jnp.float32)   # (Ne, D)
    attn = jnp.dot(alpha_full * v_e, w_out, preferred_element_type=jnp.float32) + b_out

    # scatter-add to destination nodes (aggr='add'), residual, BatchNorm1d.
    agg = jax.lax.dot_general(
        dst_oh, attn.astype(jnp.bfloat16),
        dimension_numbers=(((0,), (0,)), ((), ())),
        preferred_element_type=jnp.float32)                                     # (N, D)
    out = agg + x                                       # dropout p=0 is a no-op
    # BatchNorm1d in (default) training mode: batch statistics, biased variance.
    mean = jnp.mean(out, axis=0, keepdims=True)
    var = jnp.mean((out - mean) ** 2, axis=0, keepdims=True)
    out = (out - mean) * jax.lax.rsqrt(var + 1e-5)
    out_ref[...] = out * gamma + beta


def meta_gnn_layer(x, src_oh, dst_oh, edge_attr, w_slab):
    N, Dm = x.shape
    vm = pl.BlockSpec(memory_space=pltpu.MemorySpace.VMEM)
    return pl.pallas_call(
        meta_gnn_layer_kernel,
        out_shape=jax.ShapeDtypeStruct((N, Dm), jnp.float32),
        in_specs=[vm] * 5,
        out_specs=vm,
    )(x, src_oh, dst_oh, edge_attr, w_slab)


# -----------------------------------------------------------------------------
# Parameter construction (deterministic, PyTorch-Linear-style uniform init),
# folded + packed into a single slab on the host.
# -----------------------------------------------------------------------------
def make_layer_params(key, emb_dim=EMB_DIM, heads=HEADS, edge_attr_dim=EDGE_ATTR_DIM):
    E = emb_dim // heads
    keys = jax.random.split(key, 5)

    def lin(k, fan_in, fan_out):
        bound = 1.0 / math.sqrt(fan_in)
        kw, kb = jax.random.split(k)
        w = jax.random.uniform(kw, (fan_in, fan_out), jnp.float32, -bound, bound)
        b = jax.random.uniform(kb, (1, fan_out), jnp.float32, -bound, bound)
        return np.asarray(w), np.asarray(b)

    w_kqv, b_kqv = lin(keys[0], emb_dim, 3 * emb_dim)       # mlp_kqv
    w_edge, b_edge = lin(keys[1], edge_attr_dim, emb_dim)   # lin_edge
    att_w1, att_b1 = lin(keys[2], 3 * E, E)                 # att_mlp[0]
    att_w2, att_b2 = lin(keys[3], E, 1)                     # att_mlp[2]
    w_out, b_out = lin(keys[4], emb_dim, emb_dim)           # out_proj
    gamma = np.ones((1, emb_dim), np.float32)               # BatchNorm1d affine
    beta = np.zeros((1, emb_dim), np.float32)

    # per-head att_mlp folded into block-diagonal weights
    W1_k, W1_q, W1_e = att_w1[:E], att_w1[E:2 * E], att_w1[2 * E:]
    w2 = att_w2[:, 0]
    bd_k = np.zeros((emb_dim, emb_dim), np.float32)
    bd_q = np.zeros((emb_dim, emb_dim), np.float32)
    bd_e = np.zeros((emb_dim, emb_dim), np.float32)
    bd2 = np.zeros((emb_dim, heads), np.float32)
    expand = np.zeros((heads, emb_dim), np.float32)
    for h in range(heads):
        sl = slice(h * E, (h + 1) * E)
        bd_k[sl, sl] = W1_k
        bd_q[sl, sl] = W1_q
        bd_e[sl, sl] = W1_e
        bd2[sl, h] = w2
        expand[h, sl] = 1.0
    b1 = np.tile(att_b1, (1, heads))                        # (1, D)
    b2 = np.tile(att_b2, (1, heads))                        # (1, H) shared bias

    # fold kqv + per-head pre-projections (and 1/sqrt(E)) to the node side
    scale = 1.0 / math.sqrt(E)
    W_q, W_k, W_v = w_kqv[:, :emb_dim], w_kqv[:, emb_dim:2 * emb_dim], w_kqv[:, 2 * emb_dim:]
    b_q, b_k, b_v = b_kqv[:, :emb_dim], b_kqv[:, emb_dim:2 * emb_dim], b_kqv[:, 2 * emb_dim:]
    w_node = np.concatenate([(W_k @ bd_k) * scale, W_v, W_q @ bd_q], axis=1)  # (D, 3D) = [hk | v | hq]
    b_node = np.concatenate([(b_k @ bd_k) * scale, b_v, b_q @ bd_q], axis=1)  # (1, 3D)

    # pack everything into one (SLAB_ROWS, 3D) f32 slab (one DMA at run time)
    slab = np.zeros((SLAB_ROWS, 3 * emb_dim), np.float32)
    slab[ROW_WNODE:ROW_WNODE + emb_dim, :] = w_node
    slab[ROW_MATS:ROW_MATS + emb_dim, 0:emb_dim] = bd_e
    slab[ROW_MATS:ROW_MATS + emb_dim, emb_dim:2 * emb_dim] = w_out
    slab[ROW_MATS:ROW_MATS + emb_dim, 2 * emb_dim:2 * emb_dim + heads] = bd2
    slab[ROW_EXPAND:ROW_EXPAND + heads, 0:emb_dim] = expand
    slab[ROW_BNODE, :] = b_node[0]
    slab[ROW_BIAS1, 0:emb_dim] = b_edge[0]
    slab[ROW_BIAS1, emb_dim:2 * emb_dim] = b1[0]
    slab[ROW_BIAS1, 2 * emb_dim:2 * emb_dim + heads] = b2[0]
    slab[ROW_BIAS2, 0:emb_dim] = b_out[0]
    slab[ROW_BIAS2, emb_dim:2 * emb_dim] = gamma[0]
    slab[ROW_BIAS2, 2 * emb_dim:3 * emb_dim] = beta[0]
    slab[ROW_WEDGE:ROW_WEDGE + edge_attr_dim, 0:emb_dim] = w_edge
    return jnp.asarray(slab)


# -----------------------------------------------------------------------------
# MetaGNN.forward graph preprocessing (host-side glue, data-dependent shapes)
# -----------------------------------------------------------------------------
def preprocess_graph(edge_index, edge_attr, query_mask, num_nodes,
                     msg_pos_only=False, self_loops=True):
    edge_index = np.asarray(edge_index)
    edge_attr = np.asarray(edge_attr, np.float32)
    query_mask = np.asarray(query_mask, bool)
    if not msg_pos_only:
        support_mask = ~query_mask
    else:
        support_mask = (~query_mask) & (edge_attr[:, -1] == 1)
    # (edge_index_back / edge_attr_back unused: has_final_back=False)
    ei = np.concatenate([edge_index[:, support_mask], edge_index[::-1]], axis=1)
    ea = np.concatenate([edge_attr[support_mask], edge_attr], axis=0)
    if self_loops:
        keep = ei[0] != ei[1]                       # remove_self_loops
        ei, ea = ei[:, keep], ea[keep]
        loops = np.stack([np.arange(num_nodes), np.arange(num_nodes)])
        ei = np.concatenate([ei, loops], axis=1)    # add_self_loops, fill_value=[0,0]
        ea = np.concatenate([ea, np.zeros((num_nodes, ea.shape[1]), np.float32)], axis=0)
    return ei, ea


def meta_gnn_forward(x, edge_index, edge_attr, query_mask, layer_slabs):
    num_nodes = x.shape[0]
    ei, ea = preprocess_graph(edge_index, edge_attr, query_mask, num_nodes)
    eye = np.eye(num_nodes, dtype=np.float32)
    # one-hot values are exactly representable in bf16 -> halves one-hot bytes
    src_oh = jnp.asarray(eye[ei[0]], dtype=jnp.bfloat16)
    dst_oh = jnp.asarray(eye[ei[1]], dtype=jnp.bfloat16)
    ea = jnp.asarray(ea, dtype=jnp.float32)
    n_layers = len(layer_slabs)
    for i, slab in enumerate(layer_slabs):
        x = meta_gnn_layer(x, src_oh, dst_oh, ea, slab)
        if i != n_layers - 1:
            x = jax.nn.gelu(x, approximate=False)   # gnn_non_linear = nn.GELU()
    # gnn_layers_back is None (has_final_back=False)
    return x


if __name__ == "__main__":
    key = jax.random.PRNGKey(0)
    kx, kp = jax.random.split(key, 2)

    # Small bipartite metagraph: 16 "node" vertices, 8 "label" vertices.
    n_left, n_right = 16, 8
    num_nodes = n_left + n_right
    num_edges0 = 32
    x = jax.random.normal(kx, (num_nodes, EMB_DIM), jnp.float32)

    src = np.repeat(np.arange(n_left), 2)                    # (32,)
    dst = n_left + (np.arange(num_edges0) % n_right)         # (32,)
    edge_index = np.stack([src, dst])                        # (2, 32)
    edge_attr = np.stack(
        [np.linspace(-1.0, 1.0, num_edges0, dtype=np.float32),
         (np.arange(num_edges0) % 2).astype(np.float32)], axis=1)  # (32, 2)
    query_mask = (np.arange(num_edges0) % 4 == 0)            # (32,) bool

    layer_slabs = [make_layer_params(kp)]                    # n_layers = 1
    out = meta_gnn_forward(x, edge_index, edge_attr, query_mask, layer_slabs)
    jax.block_until_ready(out)
    assert out.shape == (num_nodes, EMB_DIM)
    assert bool(jnp.all(jnp.isfinite(out)))
    print("KERNEL_OK")
</pallas_src>

<mosaic_0001>
module attributes {stable_mosaic.version = 11 : i64} {
  func.func @meta_gnn_layer_kernel(%arg0: memref<24x32xf32, #tpu.memory_space<vmem>>, %arg1: memref<80x24xbf16, #tpu.memory_space<vmem>>, %arg2: memref<80x24xbf16, #tpu.memory_space<vmem>>, %arg3: memref<80x2xf32, #tpu.memory_space<vmem>>, %arg4: memref<80x96xf32, #tpu.memory_space<vmem>>, %arg5: memref<24x32xf32, #tpu.memory_space<vmem>>) attributes {dimension_semantics = [], scalar_prefetch = 0 : i64, scratch_operands = 0 : i64, tpu.core_type = #tpu.core_type<tc>} {
    %c0 = arith.constant 0 : index
    %c0_0 = arith.constant 0 : index
    %0 = vector.load %arg0[%c0, %c0_0] : memref<24x32xf32, #tpu.memory_space<vmem>>, vector<24x32xf32>
    %c0_1 = arith.constant 0 : index
    %c0_2 = arith.constant 0 : index
    %1 = vector.load %arg1[%c0_1, %c0_2] : memref<80x24xbf16, #tpu.memory_space<vmem>>, vector<80x24xbf16>
    %c0_3 = arith.constant 0 : index
    %c0_4 = arith.constant 0 : index
    %2 = vector.load %arg2[%c0_3, %c0_4] : memref<80x24xbf16, #tpu.memory_space<vmem>>, vector<80x24xbf16>
    %c0_5 = arith.constant 0 : index
    %c0_6 = arith.constant 0 : index
    %3 = vector.load %arg4[%c0_5, %c0_6] : memref<80x96xf32, #tpu.memory_space<vmem>>, vector<80x96xf32>
    %4 = vector.extract_strided_slice %3 {offsets = [0, 0], sizes = [32, 96], strides = [1, 1]} : vector<80x96xf32> to vector<32x96xf32>
    %5 = vector.extract_strided_slice %3 {offsets = [32, 0], sizes = [32, 32], strides = [1, 1]} : vector<80x96xf32> to vector<32x32xf32>
    %6 = vector.extract_strided_slice %3 {offsets = [32, 32], sizes = [32, 32], strides = [1, 1]} : vector<80x96xf32> to vector<32x32xf32>
    %7 = vector.extract_strided_slice %3 {offsets = [32, 64], sizes = [32, 8], strides = [1, 1]} : vector<80x96xf32> to vector<32x8xf32>
    %8 = vector.extract_strided_slice %3 {offsets = [64, 0], sizes = [8, 32], strides = [1, 1]} : vector<80x96xf32> to vector<8x32xf32>
    %9 = vector.extract_strided_slice %3 {offsets = [72, 0], sizes = [1, 96], strides = [1, 1]} : vector<80x96xf32> to vector<1x96xf32>
    %10 = vector.extract_strided_slice %3 {offsets = [73, 0], sizes = [1, 32], strides = [1, 1]} : vector<80x96xf32> to vector<1x32xf32>
    %11 = vector.extract_strided_slice %3 {offsets = [73, 32], sizes = [1, 32], strides = [1, 1]} : vector<80x96xf32> to vector<1x32xf32>
    %12 = vector.extract_strided_slice %3 {offsets = [73, 64], sizes = [1, 8], strides = [1, 1]} : vector<80x96xf32> to vector<1x8xf32>
    %13 = vector.extract_strided_slice %3 {offsets = [74, 0], sizes = [1, 32], strides = [1, 1]} : vector<80x96xf32> to vector<1x32xf32>
    %14 = vector.extract_strided_slice %3 {offsets = [74, 32], sizes = [1, 32], strides = [1, 1]} : vector<80x96xf32> to vector<1x32xf32>
    %15 = vector.extract_strided_slice %3 {offsets = [74, 64], sizes = [1, 32], strides = [1, 1]} : vector<80x96xf32> to vector<1x32xf32>
    %16 = vector.extract_strided_slice %3 {offsets = [75, 0], sizes = [2, 32], strides = [1, 1]} : vector<80x96xf32> to vector<2x32xf32>
    %cst = arith.constant dense<0.000000e+00> : vector<24x96xf32>
    %17 = tpu.matmul %0, %4, %cst {dimension_numbers = #tpu.dot_dimension_numbers<[1], [0], [0], [1], [0, 0, 1, 1], [], []>} : vector<24x32xf32>, vector<32x96xf32>, vector<24x96xf32> -> vector<24x96xf32>
    %18 = vector.broadcast %9 : vector<1x96xf32> to vector<24x96xf32>
    %19 = arith.addf %17, %18 : vector<24x96xf32>
    %20 = arith.truncf %19 : vector<24x96xf32> to vector<24x96xbf16>
    %21 = vector.extract_strided_slice %20 {offsets = [0, 0], sizes = [24, 64], strides = [1, 1]} : vector<24x96xbf16> to vector<24x64xbf16>
    %cst_7 = arith.constant dense<0.000000e+00> : vector<80x64xf32>
    %22 = tpu.matmul %1, %21, %cst_7 {dimension_numbers = #tpu.dot_dimension_numbers<[1], [0], [0], [1], [0, 0, 1, 1], [], []>} : vector<80x24xbf16>, vector<24x64xbf16>, vector<80x64xf32> -> vector<80x64xf32>
    %23 = vector.extract_strided_slice %20 {offsets = [0, 64], sizes = [24, 32], strides = [1, 1]} : vector<24x96xbf16> to vector<24x32xbf16>
    %cst_8 = arith.constant dense<0.000000e+00> : vector<80x32xf32>
    %24 = tpu.matmul %2, %23, %cst_8 {dimension_numbers = #tpu.dot_dimension_numbers<[1], [0], [0], [1], [0, 0, 1, 1], [], []>} : vector<80x24xbf16>, vector<24x32xbf16>, vector<80x32xf32> -> vector<80x32xf32>
    %25 = vector.extract_strided_slice %22 {offsets = [0, 0], sizes = [80, 32], strides = [1, 1]} : vector<80x64xf32> to vector<80x32xf32>
    %26 = vector.extract_strided_slice %22 {offsets = [0, 32], sizes = [80, 32], strides = [1, 1]} : vector<80x64xf32> to vector<80x32xf32>
    %c0_9 = arith.constant 0 : index
    %c0_10 = arith.constant 0 : index
    %27 = vector.load %arg3[%c0_9, %c0_10] : memref<80x2xf32, #tpu.memory_space<vmem>>, vector<80x2xf32>
    %cst_11 = arith.constant dense<0.000000e+00> : vector<80x32xf32>
    %28 = tpu.matmul %27, %16, %cst_11 {dimension_numbers = #tpu.dot_dimension_numbers<[1], [0], [0], [1], [0, 0, 1, 1], [], []>} : vector<80x2xf32>, vector<2x32xf32>, vector<80x32xf32> -> vector<80x32xf32>
    %29 = vector.broadcast %10 : vector<1x32xf32> to vector<80x32xf32>
    %30 = arith.addf %28, %29 : vector<80x32xf32>
    %cst_12 = arith.constant 0.000000e+00 : f32
    %31 = vector.broadcast %cst_12 : f32 to vector<80x32xf32>
    %32 = arith.maximumf %30, %31 : vector<80x32xf32>
    %cst_13 = arith.constant dense<0.000000e+00> : vector<80x32xf32>
    %33 = tpu.matmul %32, %5, %cst_13 {dimension_numbers = #tpu.dot_dimension_numbers<[1], [0], [0], [1], [0, 0, 1, 1], [], []>} : vector<80x32xf32>, vector<32x32xf32>, vector<80x32xf32> -> vector<80x32xf32>
    %34 = arith.addf %25, %24 : vector<80x32xf32>
    %35 = arith.addf %34, %33 : vector<80x32xf32>
    %36 = vector.broadcast %11 : vector<1x32xf32> to vector<80x32xf32>
    %37 = arith.addf %35, %36 : vector<80x32xf32>
    %cst_14 = arith.constant 0.000000e+00 : f32
    %38 = vector.broadcast %cst_14 : f32 to vector<80x32xf32>
    %39 = arith.maximumf %37, %38 : vector<80x32xf32>
    %cst_15 = arith.constant dense<0.000000e+00> : vector<80x8xf32>
    %40 = tpu.matmul %39, %7, %cst_15 {dimension_numbers = #tpu.dot_dimension_numbers<[1], [0], [0], [1], [0, 0, 1, 1], [], []>} : vector<80x32xf32>, vector<32x8xf32>, vector<80x8xf32> -> vector<80x8xf32>
    %41 = vector.broadcast %12 : vector<1x8xf32> to vector<80x8xf32>
    %42 = arith.addf %40, %41 : vector<80x8xf32>
    %cst_16 = arith.constant dense<0xFF800000> : vector<8xf32>
    %43 = vector.multi_reduction <maximumf>, %42, %cst_16 [0] : vector<80x8xf32> to vector<8xf32>
    %44 = vector.shape_cast %43 : vector<8xf32> to vector<1x8xf32>
    %45 = vector.broadcast %44 : vector<1x8xf32> to vector<80x8xf32>
    %46 = arith.subf %42, %45 : vector<80x8xf32>
    %47 = math.exp %46 : vector<80x8xf32>
    %48 = arith.truncf %47 : vector<80x8xf32> to vector<80x8xbf16>
    %cst_17 = arith.constant dense<0.000000e+00> : vector<24x8xf32>
    %49 = tpu.matmul %2, %48, %cst_17 {dimension_numbers = #tpu.dot_dimension_numbers<[0], [0], [1], [1], [0, 1, 1, 1], [], []>} : vector<80x24xbf16>, vector<80x8xbf16>, vector<24x8xf32> -> vector<24x8xf32>
    %50 = arith.truncf %49 : vector<24x8xf32> to vector<24x8xbf16>
    %cst_18 = arith.constant dense<0.000000e+00> : vector<80x8xf32>
    %51 = tpu.matmul %2, %50, %cst_18 {dimension_numbers = #tpu.dot_dimension_numbers<[1], [0], [0], [1], [0, 0, 1, 1], [], []>} : vector<80x24xbf16>, vector<24x8xbf16>, vector<80x8xf32> -> vector<80x8xf32>
    %cst_19 = arith.constant 1.000000e-16 : f32
    %52 = vector.broadcast %cst_19 : f32 to vector<80x8xf32>
    %53 = arith.addf %51, %52 : vector<80x8xf32>
    %54 = tpu.reciprocal %53 {approx = true} : vector<80x8xf32> -> vector<80x8xf32>
    %55 = arith.mulf %47, %54 : vector<80x8xf32>
    %cst_20 = arith.constant dense<0.000000e+00> : vector<80x32xf32>
    %56 = tpu.matmul %55, %8, %cst_20 {dimension_numbers = #tpu.dot_dimension_numbers<[1], [0], [0], [1], [0, 0, 1, 1], [], []>} : vector<80x8xf32>, vector<8x32xf32>, vector<80x32xf32> -> vector<80x32xf32>
    %57 = arith.mulf %56, %26 : vector<80x32xf32>
    %cst_21 = arith.constant dense<0.000000e+00> : vector<80x32xf32>
    %58 = tpu.matmul %57, %6, %cst_21 {dimension_numbers = #tpu.dot_dimension_numbers<[1], [0], [0], [1], [0, 0, 1, 1], [], []>} : vector<80x32xf32>, vector<32x32xf32>, vector<80x32xf32> -> vector<80x32xf32>
    %59 = vector.broadcast %13 : vector<1x32xf32> to vector<80x32xf32>
    %60 = arith.addf %58, %59 : vector<80x32xf32>
    %61 = arith.truncf %60 : vector<80x32xf32> to vector<80x32xbf16>
    %cst_22 = arith.constant dense<0.000000e+00> : vector<24x32xf32>
    %62 = tpu.matmul %2, %61, %cst_22 {dimension_numbers = #tpu.dot_dimension_numbers<[0], [0], [1], [1], [0, 1, 1, 1], [], []>} : vector<80x24xbf16>, vector<80x32xbf16>, vector<24x32xf32> -> vector<24x32xf32>
    %63 = arith.addf %62, %0 : vector<24x32xf32>
    %cst_23 = arith.constant dense<0.000000e+00> : vector<32xf32>
    %64 = vector.multi_reduction <add>, %63, %cst_23 [0] : vector<24x32xf32> to vector<32xf32>
    %65 = vector.shape_cast %64 : vector<32xf32> to vector<1x32xf32>
    %cst_24 = arith.constant 2.400000e+01 : f32
    %66 = vector.broadcast %cst_24 : f32 to vector<1x32xf32>
    %67 = arith.divf %65, %66 : vector<1x32xf32>
    %68 = vector.broadcast %67 : vector<1x32xf32> to vector<24x32xf32>
    %69 = arith.subf %63, %68 : vector<24x32xf32>
    %70 = arith.mulf %69, %69 : vector<24x32xf32>
    %cst_25 = arith.constant dense<0.000000e+00> : vector<32xf32>
    %71 = vector.multi_reduction <add>, %70, %cst_25 [0] : vector<24x32xf32> to vector<32xf32>
    %72 = vector.shape_cast %71 : vector<32xf32> to vector<1x32xf32>
    %cst_26 = arith.constant 2.400000e+01 : f32
    %73 = vector.broadcast %cst_26 : f32 to vector<1x32xf32>
    %74 = arith.divf %72, %73 : vector<1x32xf32>
    %75 = vector.broadcast %67 : vector<1x32xf32> to vector<24x32xf32>
    %76 = arith.subf %63, %75 : vector<24x32xf32>
    %cst_27 = arith.constant 9.99999974E-6 : f32
    %77 = vector.broadcast %cst_27 : f32 to vector<1x32xf32>
    %78 = arith.addf %74, %77 : vector<1x32xf32>
    %79 = math.rsqrt %78 : vector<1x32xf32>
    %80 = vector.broadcast %79 : vector<1x32xf32> to vector<24x32xf32>
    %81 = arith.mulf %76, %80 : vector<24x32xf32>
    %82 = vector.broadcast %14 : vector<1x32xf32> to vector<24x32xf32>
    %83 = arith.mulf %81, %82 : vector<24x32xf32>
    %84 = vector.broadcast %15 : vector<1x32xf32> to vector<24x32xf32>
    %85 = arith.addf %83, %84 : vector<24x32xf32>
    %c0_28 = arith.constant 0 : index
    %c0_29 = arith.constant 0 : index
    %86 = vector.load %arg5[%c0_28, %c0_29] : memref<24x32xf32, #tpu.memory_space<vmem>>, vector<24x32xf32>
    tpu.vector_store %arg5[%c0_28, %c0_29], %85 {strides = array<i32>} : memref<24x32xf32, #tpu.memory_space<vmem>>, vector<24x32xf32>,
    return
  }
}

</mosaic_0001>

<llo_original>
// kernel: tpu_custom_call.1
$region0: #{tpu_custom_call.1}
  #allocation0 [shape = 'u32[]', space=smem, size = 0x4, offset = 0x4, fixed_abs, tag = 'smem constant byte address 0x4 - core index']
  #allocation1 [shape = 'u32[72,128]{1,0:T(1,128)}', space=vmem, size = 0x9000, scoped, tag = 'internal scratch']
  %s0 = inlined_call_operand.vmem [shape: f32[24,32], index: 0, kind: input, shape index: {}]
  %s1 = inlined_call_operand.vmem [shape: bf16[80,24], index: 1, kind: input, shape index: {}]
  %s2 = inlined_call_operand.vmem [shape: bf16[80,24], index: 2, kind: input, shape index: {}]
  %s3 = inlined_call_operand.vmem [shape: f32[80,2], index: 3, kind: input, shape index: {}]
  %s4 = inlined_call_operand.vmem [shape: f32[80,96], index: 4, kind: input, shape index: {}]
  %s5 = inlined_call_operand.hbm [shape: f32[24,32], index: 5, kind: output, shape index: {}]
  %s6 = sld [smem:[#allocation0]]
  $region30: #{tpu_custom_call.1} parent=0
    _
  %s8 = ssub.s32 1, %s6
  %s9 = scalar_select 0, %s8, %s6
  $region1: #{tpu_custom_call.1} parent=0
    #allocation2 [shape = 'u8[12288]{0}', space=vmem, size = 0x3000, scoped, tag = 'output window, operand 0, single buffered']
    #allocation3 [shape = 's32[1]{0}', space=sflag, size = 0x4, scoped, tag = 'scoped memory for tpu_custom_call.1']
    %10 = vsyncpa [#allocation3], 0
    // Predicated region
    $region2: #{tpu_custom_call.1} parent=1 // pred_check
      _
    $region3: #{tpu_custom_call.1} parent=1 // pred_check_branch
      %12 = sbr.rel (0) target = $region5
    $region4: #{tpu_custom_call.1} parent=1 // pred_region
      _
    $region5: #{tpu_custom_call.1} parent=1 // pred_fallthru
      _
    // Predicated region
    $region6: #{tpu_custom_call.1} parent=1 // pred_check
      _
    $region7: #{tpu_custom_call.1} parent=1 // pred_check_branch
      %14 = sbr.rel (0) target = $region9
    $region8: #{tpu_custom_call.1} parent=1 // pred_region
      _
    $region9: #{tpu_custom_call.1} parent=1 // pred_fallthru
      _
    // Predicated region
    $region10: #{tpu_custom_call.1} parent=1 // pred_check
      _
    $region11: #{tpu_custom_call.1} parent=1 // pred_check_branch
      %16 = sbr.rel (0) target = $region13
    $region12: #{tpu_custom_call.1} parent=1 // pred_region
      _
    $region13: #{tpu_custom_call.1} parent=1 // pred_fallthru
      _
    // Predicated region
    $region14: #{tpu_custom_call.1} parent=1 // pred_check
      _
    $region15: #{tpu_custom_call.1} parent=1 // pred_check_branch
      %18 = sbr.rel (0) target = $region17
    $region16: #{tpu_custom_call.1} parent=1 // pred_region
      _
    $region17: #{tpu_custom_call.1} parent=1 // pred_fallthru
      _
    // Predicated region
    $region18: #{tpu_custom_call.1} parent=1 // pred_check
      _
    $region19: #{tpu_custom_call.1} parent=1 // pred_check_branch
      %20 = sbr.rel (0) target = $region21
    $region20: #{tpu_custom_call.1} parent=1 // pred_region
      _
    $region21: #{tpu_custom_call.1} parent=1 // pred_fallthru
      _
    %v22 = vld [vmem:[%s0] sm:$0xff]
    %v23 = vld [vmem:[%s0 + $0x8] sm:$0xff]
    %v24 = vld [vmem:[%s0 + $0x10] sm:$0xff]
    %v25 = vld [vmem:[%s1] sm:$0xf]
    %v26 = vld [vmem:[%s1 + $0x4] sm:$0xf]
    %v27 = vld [vmem:[%s1 + $0x8] sm:$0xf]
    %v28 = vld [vmem:[%s1 + $0xc] sm:$0xf]
    %v29 = vld [vmem:[%s1 + $0x10] sm:$0xf]
    %v30 = vld [vmem:[%s1 + $0x14] sm:$0xf]
    %v31 = vld [vmem:[%s1 + $0x18] sm:$0xf]
    %v32 = vld [vmem:[%s1 + $0x1c] sm:$0xf]
    %v33 = vld [vmem:[%s1 + $0x20] sm:$0xf]
    %v34 = vld [vmem:[%s1 + $0x24] sm:$0xf]
    %v35 = vld [vmem:[%s2] sm:$0xf]
    %v36 = vld [vmem:[%s2 + $0x4] sm:$0xf]
    %v37 = vld [vmem:[%s2 + $0x8] sm:$0xf]
    %v38 = vld [vmem:[%s2 + $0xc] sm:$0xf]
    %v39 = vld [vmem:[%s2 + $0x10] sm:$0xf]
    %v40 = vld [vmem:[%s2 + $0x14] sm:$0xf]
    %v41 = vld [vmem:[%s2 + $0x18] sm:$0xf]
    %v42 = vld [vmem:[%s2 + $0x1c] sm:$0xf]
    %v43 = vld [vmem:[%s2 + $0x20] sm:$0xf]
    %v44 = vld [vmem:[%s2 + $0x24] sm:$0xf]
    %v45 = vld [vmem:[%s4] sm:$0xff]
    %v46 = vld [vmem:[%s4 + $0x8] sm:$0xff]
    %v47 = vld [vmem:[%s4 + $0x10] sm:$0xff]
    %v48 = vld [vmem:[%s4 + $0x18] sm:$0xff]
    %v49 = vld [vmem:[%s4 + $0x20] sm:$0xff]
    %v50 = vld [vmem:[%s4 + $0x28] sm:$0xff]
    %v51 = vld [vmem:[%s4 + $0x30] sm:$0xff]
    %v52 = vld [vmem:[%s4 + $0x38] sm:$0xff]
    %v53 = vld [vmem:[%s4 + $0x40] sm:$0xff]
    %v54 = vld [vmem:[%s4 + $0x48] sm:$0xff]
    %v55 = vperm.slane %v54, 0
    %vm56 = vcmask 261120
    %v58 = vsel %vm56, %v22, 0
    %v61 = vsel %vm56, %v23, 0
    %v64 = vsel %vm56, %v24, 0
    %66 = vmatpush.msra.mxu0 0.0
    %67 = vmatpush.msra.mxu0 0.0
    %68 = vmatpush.msra.mxu0 0.0
    %69 = vmatpush.msra.mxu0 0.0
    %70 = vmatpush.msra.mxu0 0.0
    %71 = vmatpush.msra.mxu0 0.0
    %72 = vmatpush.msra.mxu0 0.0
    %73 = vmatpush.msra.mxu0 0.0
    %74 = vmatpush.msra.mxu0 0.0
    %75 = vmatpush.msra.mxu0 0.0
    %76 = vmatpush.msra.mxu0 0.0
    %77 = vmatpush.msra.mxu0 0.0
    %78 = vmatpush.msra.mxu0 %v48
    %79 = vmatpush.msra.mxu0 %v47
    %80 = vmatpush.msra.mxu0 %v46
    %81 = vmatpush.msra.mxu0 %v45
    %82 = vmatmul.f32.gmra.mxu0 %v58
    %v83 = vpop.f32.mrf.mxu0
    %v84 = vadd.f32 %v55, %v83
    %85 = vmatmul.f32.gmra.mxu0 %v61
    %v86 = vpop.f32.mrf.mxu0
    %v87 = vadd.f32 %v55, %v86
    %88 = vmatmul.f32.gmra.mxu0 %v64
    %v89 = vpop.f32.mrf.mxu0
    %v90 = vadd.f32 %v55, %v89
    %91 = vdwg.mxu0
    %v92 = vpack.c.bf16 %v84, %v84
    %v93 = vpack.c.bf16 %v87, %v87
    %v94 = vpack.c.bf16 %v90, %v90
    %v105 = vunpack.c.l.b16 %v25
    %v106 = vunpack.c.l.b16 %v26
    %v107 = vunpack.c.l.b16 %v27
    %v108 = vunpack.c.l.b16 %v28
    %v109 = vunpack.c.l.b16 %v29
    %v110 = vunpack.c.l.b16 %v30
    %v111 = vunpack.c.l.b16 %v31
    %v112 = vunpack.c.l.b16 %v32
    %v113 = vunpack.c.l.b16 %v33
    %v114 = vunpack.c.l.b16 %v34
    %v115 = vpack.c.b16 %v106, %v105
    %v116 = vpack.c.b16 %v108, %v107
    %v117 = vpack.c.b16 %v110, %v109
    %v118 = vpack.c.b16 %v112, %v111
    %v119 = vpack.c.b16 %v114, %v113
    %v123 = vunpack.c.l.b16 %v92
    %v124 = vunpack.c.l.b16 %v93
    %v125 = vunpack.c.l.b16 %v94
    %v126 = vpack.c.b16 %v124, %v123
    %v127 = vpack.c.b16 %v125, %v125
    %vm129 = vcmask 195584
    %v131 = vsel %vm129, %v115, 0
    %v134 = vsel %vm129, %v116, 0
    %v137 = vsel %vm129, %v117, 0
    %v140 = vsel %vm129, %v118, 0
    %v143 = vsel %vm129, %v119, 0
    %vm145 = vcmask 1043456
    %v147 = vsel %vm145, %v127, 0
    %149 = vmatpush.bf16.msra.mxu0 0
    %150 = vmatpush.bf16.msra.mxu0 0
    %151 = vmatpush.bf16.msra.mxu0 0
    %152 = vmatpush.bf16.msra.mxu0 0
    %153 = vmatpush.bf16.msra.mxu0 0
    %154 = vmatpush.bf16.msra.mxu0 0
    %155 = vmatpush.bf16.msra.mxu0 %v147
    %156 = vmatpush.bf16.msra.mxu0 %v126
    %157 = vmatmul.bf16.gmra.mxu0 %v131
    %v158 = vpop.f32.mrf.mxu0
    %v159 = vadd.f32 0.0, %v158
    %v160 = vpop.f32.mrf.mxu0
    %v161 = vadd.f32 0.0, %v160
    %162 = vmatmul.bf16.gmra.mxu0 %v134
    %v163 = vpop.f32.mrf.mxu0
    %v164 = vadd.f32 0.0, %v163
    %v165 = vpop.f32.mrf.mxu0
    %v166 = vadd.f32 0.0, %v165
    %167 = vmatmul.bf16.gmra.mxu0 %v137
    %v168 = vpop.f32.mrf.mxu0
    %v169 = vadd.f32 0.0, %v168
    %v170 = vpop.f32.mrf.mxu0
    %v171 = vadd.f32 0.0, %v170
    %172 = vmatmul.bf16.gmra.mxu0 %v140
    %v173 = vpop.f32.mrf.mxu0
    %v174 = vadd.f32 0.0, %v173
    %v175 = vpop.f32.mrf.mxu0
    %v176 = vadd.f32 0.0, %v175
    %177 = vmatmul.bf16.gmra.mxu0 %v143
    %v178 = vpop.f32.mrf.mxu0
    %v179 = vadd.f32 0.0, %v178
    %v180 = vpop.f32.mrf.mxu0
    %v181 = vadd.f32 0.0, %v180
    %182 = vdwg.mxu0
    %v193 = vunpack.c.l.b16 %v35
    %v194 = vunpack.c.l.b16 %v36
    %v195 = vunpack.c.l.b16 %v37
    %v196 = vunpack.c.l.b16 %v38
    %v197 = vunpack.c.l.b16 %v39
    %v198 = vunpack.c.l.b16 %v40
    %v199 = vunpack.c.l.b16 %v41
    %v200 = vunpack.c.l.b16 %v42
    %v201 = vunpack.c.l.b16 %v43
    %v202 = vunpack.c.l.b16 %v44
    %v203 = vpack.c.b16 %v194, %v193
    %v204 = vpack.c.b16 %v196, %v195
    %v205 = vpack.c.b16 %v198, %v197
    %v206 = vpack.c.b16 %v200, %v199
    %v207 = vpack.c.b16 %v202, %v201
    %208 = vrot.lane.b32.xlu0 %v126, 64
    %v209 = vpop.permute.xlu0 %208
    %210 = vrot.lane.b32.xlu0 %v127, 64
    %v211 = vpop.permute.xlu0 %210
    %v214 = vsel %vm129, %v203, 0
    %v217 = vsel %vm129, %v204, 0
    %v220 = vsel %vm129, %v205, 0
    %v223 = vsel %vm129, %v206, 0
    %v226 = vsel %vm129, %v207, 0
    %v229 = vsel %vm145, %v211, 0
    %231 = vmatpush.bf16.msra.mxu0 0
    %232 = vmatpush.bf16.msra.mxu0 0
    %233 = vmatpush.bf16.msra.mxu0 0
    %234 = vmatpush.bf16.msra.mxu0 0
    %235 = vmatpush.bf16.msra.mxu0 0
    %236 = vmatpush.bf16.msra.mxu0 0
    %237 = vmatpush.bf16.msra.mxu0 %v229
    %238 = vmatpush.bf16.msra.mxu0 %v209
    %239 = vmatmul.bf16.gmra.mxu0 %v214
    %v240 = vpop.f32.mrf.mxu0
    %v241 = vadd.f32 0.0, %v240
    %v242 = vpop.f32.mrf.mxu0
    %v243 = vadd.f32 0.0, %v242
    %244 = vmatmul.bf16.gmra.mxu0 %v217
    %v245 = vpop.f32.mrf.mxu0
    %v246 = vadd.f32 0.0, %v245
    %v247 = vpop.f32.mrf.mxu0
    %v248 = vadd.f32 0.0, %v247
    %249 = vmatmul.bf16.gmra.mxu0 %v220
    %v250 = vpop.f32.mrf.mxu0
    %v251 = vadd.f32 0.0, %v250
    %v252 = vpop.f32.mrf.mxu0
    %v253 = vadd.f32 0.0, %v252
    %254 = vmatmul.bf16.gmra.mxu0 %v223
    %v255 = vpop.f32.mrf.mxu0
    %v256 = vadd.f32 0.0, %v255
    %v257 = vpop.f32.mrf.mxu0
    %v258 = vadd.f32 0.0, %v257
    %259 = vmatmul.bf16.gmra.mxu0 %v226
    %v260 = vpop.f32.mrf.mxu0
    %v261 = vadd.f32 0.0, %v260
    %v262 = vpop.f32.mrf.mxu0
    %v263 = vadd.f32 0.0, %v262
    %264 = vdwg.mxu0
    %v265 = vld [vmem:[%s3] sm:$0xff]
    %v266 = vld [vmem:[%s3 + $0x8] sm:$0xff]
    %v267 = vld [vmem:[%s3 + $0x10] sm:$0xff]
    %v268 = vld [vmem:[%s3 + $0x18] sm:$0xff]
    %v269 = vld [vmem:[%s3 + $0x20] sm:$0xff]
    %v270 = vld [vmem:[%s3 + $0x28] sm:$0xff]
    %v271 = vld [vmem:[%s3 + $0x30] sm:$0xff]
    %v272 = vld [vmem:[%s3 + $0x38] sm:$0xff]
    %v273 = vld [vmem:[%s3 + $0x40] sm:$0xff]
    %v274 = vld [vmem:[%s3 + $0x48] sm:$0xff]
    %v275 = vperm.slane %v54, 1
    %v277 = vrot.slane %v54, 3
    %vm278 = vcmask 15360
    %v280 = vsel %vm278, %v265, 0
    %v283 = vsel %vm278, %v266, 0
    %v286 = vsel %vm278, %v267, 0
    %v289 = vsel %vm278, %v268, 0
    %v292 = vsel %vm278, %v269, 0
    %v295 = vsel %vm278, %v270, 0
    %v298 = vsel %vm278, %v271, 0
    %v301 = vsel %vm278, %v272, 0
    %v304 = vsel %vm278, %v273, 0
    %v307 = vsel %vm278, %v274, 0
    %vm309 = vcmask 1041408
    %v310 = vsel %vm309, %v277, 0
    %312 = vmatpush.msra.mxu0 0.0
    %313 = vmatpush.msra.mxu0 0.0
    %314 = vmatpush.msra.mxu0 0.0
    %315 = vmatpush.msra.mxu0 0.0
    %316 = vmatpush.msra.mxu0 0.0
    %317 = vmatpush.msra.mxu0 0.0
    %318 = vmatpush.msra.mxu0 0.0
    %319 = vmatpush.msra.mxu0 0.0
    %320 = vmatpush.msra.mxu0 0.0
    %321 = vmatpush.msra.mxu0 0.0
    %322 = vmatpush.msra.mxu0 0.0
    %323 = vmatpush.msra.mxu0 0.0
    %324 = vmatpush.msra.mxu0 0.0
    %325 = vmatpush.msra.mxu0 0.0
    %326 = vmatpush.msra.mxu0 0.0
    %327 = vmatpush.msra.mxu0 %v310
    %328 = vmatmul.f32.gmra.mxu0 %v280
    %v329 = vpop.f32.mrf.mxu0
    %v330 = vadd.f32 %v275, %v329
    %331 = vmatmul.f32.gmra.mxu0 %v283
    %v332 = vpop.f32.mrf.mxu0
    %v333 = vadd.f32 %v275, %v332
    %334 = vmatmul.f32.gmra.mxu0 %v286
    %v335 = vpop.f32.mrf.mxu0
    %v336 = vadd.f32 %v275, %v335
    %337 = vmatmul.f32.gmra.mxu0 %v289
    %v338 = vpop.f32.mrf.mxu0
    %v339 = vadd.f32 %v275, %v338
    %340 = vmatmul.f32.gmra.mxu0 %v292
    %v341 = vpop.f32.mrf.mxu0
    %v342 = vadd.f32 %v275, %v341
    %343 = vmatmul.f32.gmra.mxu0 %v295
    %v344 = vpop.f32.mrf.mxu0
    %v345 = vadd.f32 %v275, %v344
    %346 = vmatmul.f32.gmra.mxu0 %v298
    %v347 = vpop.f32.mrf.mxu0
    %v348 = vadd.f32 %v275, %v347
    %349 = vmatmul.f32.gmra.mxu0 %v301
    %v350 = vpop.f32.mrf.mxu0
    %v351 = vadd.f32 %v275, %v350
    %352 = vmatmul.f32.gmra.mxu0 %v304
    %v353 = vpop.f32.mrf.mxu0
    %v354 = vadd.f32 %v275, %v353
    %355 = vmatmul.f32.gmra.mxu0 %v307
    %v356 = vpop.f32.mrf.mxu0
    %v357 = vadd.f32 %v275, %v356
    %358 = vdwg.mxu0
    %v359 = vmax.f32 %v330, 0.0
    %v360 = vmax.f32 %v333, 0.0
    %v361 = vmax.f32 %v336, 0.0
    %v362 = vmax.f32 %v339, 0.0
    %v363 = vmax.f32 %v342, 0.0
    %v364 = vmax.f32 %v345, 0.0
    %v365 = vmax.f32 %v348, 0.0
    %v366 = vmax.f32 %v351, 0.0
    %v367 = vmax.f32 %v354, 0.0
    %v368 = vmax.f32 %v357, 0.0
    %v370 = vsel %vm56, %v359, 0
    %v373 = vsel %vm56, %v360, 0
    %v376 = vsel %vm56, %v361, 0
    %v379 = vsel %vm56, %v362, 0
    %v382 = vsel %vm56, %v363, 0
    %v385 = vsel %vm56, %v364, 0
    %v388 = vsel %vm56, %v365, 0
    %v391 = vsel %vm56, %v366, 0
    %v394 = vsel %vm56, %v367, 0
    %v397 = vsel %vm56, %v368, 0
    %399 = vmatpush.msra.mxu0 0.0
    %400 = vmatpush.msra.mxu0 0.0
    %401 = vmatpush.msra.mxu0 0.0
    %402 = vmatpush.msra.mxu0 0.0
    %403 = vmatpush.msra.mxu0 0.0
    %404 = vmatpush.msra.mxu0 0.0
    %405 = vmatpush.msra.mxu0 0.0
    %406 = vmatpush.msra.mxu0 0.0
    %407 = vmatpush.msra.mxu0 0.0
    %408 = vmatpush.msra.mxu0 0.0
    %409 = vmatpush.msra.mxu0 0.0
    %410 = vmatpush.msra.mxu0 0.0
    %411 = vmatpush.msra.mxu0 %v52
    %412 = vmatpush.msra.mxu0 %v51
    %413 = vmatpush.msra.mxu0 %v50
    %414 = vmatpush.msra.mxu0 %v49
    %415 = vmatmul.f32.gmra.mxu0 %v370
    %v416 = vpop.f32.mrf.mxu0
    %v417 = vadd.f32 0.0, %v416
    %418 = vmatmul.f32.gmra.mxu0 %v373
    %v419 = vpop.f32.mrf.mxu0
    %v420 = vadd.f32 0.0, %v419
    %421 = vmatmul.f32.gmra.mxu0 %v376
    %v422 = vpop.f32.mrf.mxu0
    %v423 = vadd.f32 0.0, %v422
    %424 = vmatmul.f32.gmra.mxu0 %v379
    %v425 = vpop.f32.mrf.mxu0
    %v426 = vadd.f32 0.0, %v425
    %427 = vmatmul.f32.gmra.mxu0 %v382
    %v428 = vpop.f32.mrf.mxu0
    %v429 = vadd.f32 0.0, %v428
    %430 = vmatmul.f32.gmra.mxu0 %v385
    %v431 = vpop.f32.mrf.mxu0
    %v432 = vadd.f32 0.0, %v431
    %433 = vmatmul.f32.gmra.mxu0 %v388
    %v434 = vpop.f32.mrf.mxu0
    %v435 = vadd.f32 0.0, %v434
    %436 = vmatmul.f32.gmra.mxu0 %v391
    %v437 = vpop.f32.mrf.mxu0
    %v438 = vadd.f32 0.0, %v437
    %439 = vmatmul.f32.gmra.mxu0 %v394
    %v440 = vpop.f32.mrf.mxu0
    %v441 = vadd.f32 0.0, %v440
    %442 = vmatmul.f32.gmra.mxu0 %v397
    %v443 = vpop.f32.mrf.mxu0
    %v444 = vadd.f32 0.0, %v443
    %445 = vdwg.mxu0
    %v446 = vadd.f32 %v159, %v241
    %v447 = vadd.f32 %v161, %v243
    %v448 = vadd.f32 %v164, %v246
    %v449 = vadd.f32 %v166, %v248
    %v450 = vadd.f32 %v169, %v251
    %v451 = vadd.f32 %v171, %v253
    %v452 = vadd.f32 %v174, %v256
    %v453 = vadd.f32 %v176, %v258
    %v454 = vadd.f32 %v179, %v261
    %v455 = vadd.f32 %v181, %v263
    %v456 = vadd.f32 %v446, %v417
    %v457 = vadd.f32 %v447, %v420
    %v458 = vadd.f32 %v448, %v423
    %v459 = vadd.f32 %v449, %v426
    %v460 = vadd.f32 %v450, %v429
    %v461 = vadd.f32 %v451, %v432
    %v462 = vadd.f32 %v452, %v435
    %v463 = vadd.f32 %v453, %v438
    %v464 = vadd.f32 %v454, %v441
    %v465 = vadd.f32 %v455, %v444
    %467 = vrot.lane.b32.xlu0 %v275, 96
    %v468 = vpop.permute.xlu0 %467
    %v470 = vadd.f32 %v456, %v468
    %v471 = vadd.f32 %v457, %v468
    %v472 = vadd.f32 %v458, %v468
    %v473 = vadd.f32 %v459, %v468
    %v474 = vadd.f32 %v460, %v468
    %v475 = vadd.f32 %v461, %v468
    %v476 = vadd.f32 %v462, %v468
    %v477 = vadd.f32 %v463, %v468
    %v478 = vadd.f32 %v464, %v468
    %v479 = vadd.f32 %v465, %v468
    %v480 = vmax.f32 %v470, 0.0
    %v481 = vmax.f32 %v471, 0.0
    %v482 = vmax.f32 %v472, 0.0
    %v483 = vmax.f32 %v473, 0.0
    %v484 = vmax.f32 %v474, 0.0
    %v485 = vmax.f32 %v475, 0.0
    %v486 = vmax.f32 %v476, 0.0
    %v487 = vmax.f32 %v477, 0.0
    %v488 = vmax.f32 %v478, 0.0
    %v489 = vmax.f32 %v479, 0.0
    %494 = vrot.lane.b32.xlu0 %v49, 64
    %v495 = vpop.permute.xlu0 %494
    %496 = vrot.lane.b32.xlu0 %v50, 64
    %v497 = vpop.permute.xlu0 %496
    %498 = vrot.lane.b32.xlu0 %v51, 64
    %v499 = vpop.permute.xlu0 %498
    %500 = vrot.lane.b32.xlu0 %v52, 64
    %v501 = vpop.permute.xlu0 %500
    %506 = vrot.lane.b32.xlu0 %v275, 64
    %v507 = vpop.permute.xlu0 %506
    %v510 = vsel %vm56, %v480, 0
    %v513 = vsel %vm56, %v481, 0
    %v516 = vsel %vm56, %v482, 0
    %v519 = vsel %vm56, %v483, 0
    %v522 = vsel %vm56, %v484, 0
    %v525 = vsel %vm56, %v485, 0
    %v528 = vsel %vm56, %v486, 0
    %v531 = vsel %vm56, %v487, 0
    %v534 = vsel %vm56, %v488, 0
    %v537 = vsel %vm56, %v489, 0
    %539 = vmatpush.msra.mxu0 0.0
    %540 = vmatpush.msra.mxu0 0.0
    %541 = vmatpush.msra.mxu0 0.0
    %542 = vmatpush.msra.mxu0 0.0
    %543 = vmatpush.msra.mxu0 0.0
    %544 = vmatpush.msra.mxu0 0.0
    %545 = vmatpush.msra.mxu0 0.0
    %546 = vmatpush.msra.mxu0 0.0
    %547 = vmatpush.msra.mxu0 0.0
    %548 = vmatpush.msra.mxu0 0.0
    %549 = vmatpush.msra.mxu0 0.0
    %550 = vmatpush.msra.mxu0 0.0
    %551 = vmatpush.msra.mxu0 %v501
    %552 = vmatpush.msra.mxu0 %v499
    %553 = vmatpush.msra.mxu0 %v497
    %554 = vmatpush.msra.mxu0 %v495
    %555 = vmatmul.f32.gmra.mxu0 %v510
    %v556 = vpop.f32.mrf.mxu0
    %v557 = vadd.f32 %v507, %v556
    %558 = vmatmul.f32.gmra.mxu0 %v513
    %v559 = vpop.f32.mrf.mxu0
    %v560 = vadd.f32 %v507, %v559
    %561 = vmatmul.f32.gmra.mxu0 %v516
    %v562 = vpop.f32.mrf.mxu0
    %v563 = vadd.f32 %v507, %v562
    %564 = vmatmul.f32.gmra.mxu0 %v519
    %v565 = vpop.f32.mrf.mxu0
    %v566 = vadd.f32 %v507, %v565
    %567 = vmatmul.f32.gmra.mxu0 %v522
    %v568 = vpop.f32.mrf.mxu0
    %v569 = vadd.f32 %v507, %v568
    %570 = vmatmul.f32.gmra.mxu0 %v525
    %v571 = vpop.f32.mrf.mxu0
    %v572 = vadd.f32 %v507, %v571
    %573 = vmatmul.f32.gmra.mxu0 %v528
    %v574 = vpop.f32.mrf.mxu0
    %v575 = vadd.f32 %v507, %v574
    %576 = vmatmul.f32.gmra.mxu0 %v531
    %v577 = vpop.f32.mrf.mxu0
    %v578 = vadd.f32 %v507, %v577
    %579 = vmatmul.f32.gmra.mxu0 %v534
    %v580 = vpop.f32.mrf.mxu0
    %v581 = vadd.f32 %v507, %v580
    %582 = vmatmul.f32.gmra.mxu0 %v537
    %v583 = vpop.f32.mrf.mxu0
    %v584 = vadd.f32 %v507, %v583
    %585 = vdwg.mxu0
    %vm586 = vcmask 64512
    %v587 = vsel %vm586, %v557, -inf
    %v588 = vsel %vm586, %v560, -inf
    %v589 = vsel %vm586, %v563, -inf
    %v590 = vsel %vm586, %v566, -inf
    %v591 = vsel %vm586, %v569, -inf
    %v592 = vmax.f32 %v587, %v591
    %v593 = vsel %vm586, %v572, -inf
    %v594 = vmax.f32 %v588, %v593
    %v595 = vsel %vm586, %v575, -inf
    %v596 = vmax.f32 %v589, %v595
    %v597 = vsel %vm586, %v578, -inf
    %v598 = vmax.f32 %v590, %v597
    %v599 = vsel %vm586, %v581, -inf
    %v600 = vmax.f32 %v592, %v599
    %v601 = vsel %vm586, %v584, -inf
    %v602 = vmax.f32 %v594, %v601
    %v603 = vmax.f32 %v600, %v602
    %v604 = vmax.f32 %v596, %v598
    %v605 = vmax.f32 %v603, %v604
    %v606 = vrot.slane %v605, 4
    %v607 = vmax.f32 %v605, %v606
    %v608 = vrot.slane %v607, 2
    %v609 = vmax.f32 %v607, %v608
    %v610 = vrot.slane %v609, 1
    %v611 = vmax.f32 %v609, %v610
    %v612 = vsub.f32 %v557, %v611
    %v613 = vsub.f32 %v560, %v611
    %v614 = vsub.f32 %v563, %v611
    %v615 = vsub.f32 %v566, %v611
    %v616 = vsub.f32 %v569, %v611
    %v617 = vsub.f32 %v572, %v611
    %v618 = vsub.f32 %v575, %v611
    %v619 = vsub.f32 %v578, %v611
    %v620 = vsub.f32 %v581, %v611
    %v621 = vsub.f32 %v584, %v611
    %v622 = vmul.f32 %v612, 1.442695
    %v623 = vpow.pop %v622
    %v624 = vmul.f32 %v613, 1.442695
    %v625 = vpow.pop %v624
    %v626 = vmul.f32 %v614, 1.442695
    %v627 = vpow.pop %v626
    %v628 = vmul.f32 %v615, 1.442695
    %v629 = vpow.pop %v628
    %v630 = vmul.f32 %v616, 1.442695
    %v631 = vpow.pop %v630
    %v632 = vmul.f32 %v617, 1.442695
    %v633 = vpow.pop %v632
    %v634 = vmul.f32 %v618, 1.442695
    %v635 = vpow.pop %v634
    %v636 = vmul.f32 %v619, 1.442695
    %v637 = vpow.pop %v636
    %v638 = vmul.f32 %v620, 1.442695
    %v639 = vpow.pop %v638
    %v640 = vmul.f32 %v621, 1.442695
    %v641 = vpow.pop %v640
    %v642 = vpack.c.bf16 %v625, %v623
    %v643 = vpack.c.bf16 %v629, %v627
    %v644 = vpack.c.bf16 %v633, %v631
    %v645 = vpack.c.bf16 %v637, %v635
    %v646 = vpack.c.bf16 %v641, %v639
    %652 = vxpose.xlu0.c.b16.start [1/8] %v203, 128
    %653 = vxpose.xlu0.c.b16.cont [2/8] %v204, 128
    %654 = vxpose.xlu0.c.b16.cont [3/8] %v205, 128
    %655 = vxpose.xlu0.c.b16.cont [4/8] %v206, 128
    %656 = vxpose.xlu0.c.b16.cont [5/8] %v207, 128
    %657 = vxpose.xlu0.c.b16.cont [6/8] 0, 128
    %658 = vxpose.xlu0.c.b16.cont [7/8] 0, 128
    %659 = vxpose.xlu0.c.b16.end [8/8] 0, 128
    %v660 = vpop.trf.xlu0
    %v661 = vpop.trf.xlu0
    %v662 = vpop.trf.xlu0
    %v663 = vpop.trf.xlu0
    %v664 = vpop.trf.xlu0
    %v665 = vpop.trf.xlu0
    %v666 = vpop.trf.xlu0
    %v667 = vpop.trf.xlu0
    %vm668 = vcmask 654336
    %v670 = vsel %vm668, %v660, 0
    %v673 = vsel %vm668, %v661, 0
    %675 = vmatpush.bf16.msra.mxu0 0
    %676 = vmatpush.bf16.msra.mxu0 0
    %677 = vmatpush.bf16.msra.mxu0 0
    %678 = vmatpush.bf16.msra.mxu0 %v646
    %679 = vmatpush.bf16.msra.mxu0 %v645
    %680 = vmatpush.bf16.msra.mxu0 %v644
    %681 = vmatpush.bf16.msra.mxu0 %v643
    %682 = vmatpush.bf16.msra.mxu0 %v642
    %683 = vmatmul.bf16.gmra.mxu0 %v670
    %v684 = vpop.f32.mrf.mxu0
    %v685 = vadd.f32 0.0, %v684
    %v686 = vpop.f32.mrf.mxu0
    %v687 = vadd.f32 0.0, %v686
    %688 = vmatmul.bf16.gmra.mxu0 %v673
    %v689 = vpop.f32.mrf.mxu0
    %v690 = vadd.f32 0.0, %v689
    %v691 = vpop.f32.mrf.mxu0
    %692 = vdwg.mxu0
    %v693 = vpack.c.bf16 %v687, %v685
    %v694 = vpack.c.bf16 %v690, %v690
    %v696 = vsel %vm145, %v694, 0
    %698 = vmatpush.bf16.msra.mxu0 0
    %699 = vmatpush.bf16.msra.mxu0 0
    %700 = vmatpush.bf16.msra.mxu0 0
    %701 = vmatpush.bf16.msra.mxu0 0
    %702 = vmatpush.bf16.msra.mxu0 0
    %703 = vmatpush.bf16.msra.mxu0 0
    %704 = vmatpush.bf16.msra.mxu0 %v696
    %705 = vmatpush.bf16.msra.mxu0 %v693
    %706 = vmatmul.bf16.gmra.mxu0 %v214
    %v707 = vpop.f32.mrf.mxu0
    %v708 = vadd.f32 1e-16, %v707
    %v709 = vpop.f32.mrf.mxu0
    %v710 = vadd.f32 1e-16, %v709
    %711 = vmatmul.bf16.gmra.mxu0 %v217
    %v712 = vpop.f32.mrf.mxu0
    %v713 = vadd.f32 1e-16, %v712
    %v714 = vpop.f32.mrf.mxu0
    %v715 = vadd.f32 1e-16, %v714
    %716 = vmatmul.bf16.gmra.mxu0 %v220
    %v717 = vpop.f32.mrf.mxu0
    %v718 = vadd.f32 1e-16, %v717
    %v719 = vpop.f32.mrf.mxu0
    %v720 = vadd.f32 1e-16, %v719
    %721 = vmatmul.bf16.gmra.mxu0 %v223
    %v722 = vpop.f32.mrf.mxu0
    %v723 = vadd.f32 1e-16, %v722
    %v724 = vpop.f32.mrf.mxu0
    %v725 = vadd.f32 1e-16, %v724
    %726 = vmatmul.bf16.gmra.mxu0 %v226
    %v727 = vpop.f32.mrf.mxu0
    %v728 = vadd.f32 1e-16, %v727
    %v729 = vpop.f32.mrf.mxu0
    %v730 = vadd.f32 1e-16, %v729
    %731 = vdwg.mxu0
    %v732 = vrcp.pop %v708
    %v733 = vrcp.pop %v710
    %v734 = vrcp.pop %v713
    %v735 = vrcp.pop %v715
    %v736 = vrcp.pop %v718
    %v737 = vrcp.pop %v720
    %v738 = vrcp.pop %v723
    %v739 = vrcp.pop %v725
    %v740 = vrcp.pop %v728
    %v741 = vrcp.pop %v730
    %v742 = vmul.f32 %v623, %v732
    %v743 = vmul.f32 %v625, %v733
    %v744 = vmul.f32 %v627, %v734
    %v745 = vmul.f32 %v629, %v735
    %v746 = vmul.f32 %v631, %v736
    %v747 = vmul.f32 %v633, %v737
    %v748 = vmul.f32 %v635, %v738
    %v749 = vmul.f32 %v637, %v739
    %v750 = vmul.f32 %v639, %v740
    %v751 = vmul.f32 %v641, %v741
    %v753 = vsel %vm586, %v742, 0
    %v756 = vsel %vm586, %v743, 0
    %v759 = vsel %vm586, %v744, 0
    %v762 = vsel %vm586, %v745, 0
    %v765 = vsel %vm586, %v746, 0
    %v768 = vsel %vm586, %v747, 0
    %v771 = vsel %vm586, %v748, 0
    %v774 = vsel %vm586, %v749, 0
    %v777 = vsel %vm586, %v750, 0
    %v780 = vsel %vm586, %v751, 0
    %782 = vmatpush.msra.mxu0 0.0
    %783 = vmatpush.msra.mxu0 0.0
    %784 = vmatpush.msra.mxu0 0.0
    %785 = vmatpush.msra.mxu0 0.0
    %786 = vmatpush.msra.mxu0 0.0
    %787 = vmatpush.msra.mxu0 0.0
    %788 = vmatpush.msra.mxu0 0.0
    %789 = vmatpush.msra.mxu0 0.0
    %790 = vmatpush.msra.mxu0 0.0
    %791 = vmatpush.msra.mxu0 0.0
    %792 = vmatpush.msra.mxu0 0.0
    %793 = vmatpush.msra.mxu0 0.0
    %794 = vmatpush.msra.mxu0 0.0
    %795 = vmatpush.msra.mxu0 0.0
    %796 = vmatpush.msra.mxu0 0.0
    %797 = vmatpush.msra.mxu0 %v53
    %798 = vmatmul.f32.gmra.mxu0 %v753
    %v799 = vpop.f32.mrf.mxu0
    %v800 = vadd.f32 0.0, %v799
    %801 = vmatmul.f32.gmra.mxu0 %v756
    %v802 = vpop.f32.mrf.mxu0
    %v803 = vadd.f32 0.0, %v802
    %804 = vmatmul.f32.gmra.mxu0 %v759
    %v805 = vpop.f32.mrf.mxu0
    %v806 = vadd.f32 0.0, %v805
    %807 = vmatmul.f32.gmra.mxu0 %v762
    %v808 = vpop.f32.mrf.mxu0
    %v809 = vadd.f32 0.0, %v808
    %810 = vmatmul.f32.gmra.mxu0 %v765
    %v811 = vpop.f32.mrf.mxu0
    %v812 = vadd.f32 0.0, %v811
    %813 = vmatmul.f32.gmra.mxu0 %v768
    %v814 = vpop.f32.mrf.mxu0
    %v815 = vadd.f32 0.0, %v814
    %816 = vmatmul.f32.gmra.mxu0 %v771
    %v817 = vpop.f32.mrf.mxu0
    %v818 = vadd.f32 0.0, %v817
    %819 = vmatmul.f32.gmra.mxu0 %v774
    %v820 = vpop.f32.mrf.mxu0
    %v821 = vadd.f32 0.0, %v820
    %822 = vmatmul.f32.gmra.mxu0 %v777
    %v823 = vpop.f32.mrf.mxu0
    %v824 = vadd.f32 0.0, %v823
    %825 = vmatmul.f32.gmra.mxu0 %v780
    %v826 = vpop.f32.mrf.mxu0
    %v827 = vadd.f32 0.0, %v826
    %828 = vdwg.mxu0
    %839 = vrot.lane.b32.xlu0 %v159, 96
    %v840 = vpop.permute.xlu0 %839
    %841 = vrot.lane.b32.xlu0 %v161, 96
    %v842 = vpop.permute.xlu0 %841
    %843 = vrot.lane.b32.xlu0 %v164, 96
    %v844 = vpop.permute.xlu0 %843
    %845 = vrot.lane.b32.xlu0 %v166, 96
    %v846 = vpop.permute.xlu0 %845
    %847 = vrot.lane.b32.xlu0 %v169, 96
    %v848 = vpop.permute.xlu0 %847
    %849 = vrot.lane.b32.xlu0 %v171, 96
    %v850 = vpop.permute.xlu0 %849
    %851 = vrot.lane.b32.xlu0 %v174, 96
    %v852 = vpop.permute.xlu0 %851
    %853 = vrot.lane.b32.xlu0 %v176, 96
    %v854 = vpop.permute.xlu0 %853
    %855 = vrot.lane.b32.xlu0 %v179, 96
    %v856 = vpop.permute.xlu0 %855
    %857 = vrot.lane.b32.xlu0 %v181, 96
    %v858 = vpop.permute.xlu0 %857
    %v869 = vmul.f32 %v800, %v840
    %v870 = vmul.f32 %v803, %v842
    %v871 = vmul.f32 %v806, %v844
    %v872 = vmul.f32 %v809, %v846
    %v873 = vmul.f32 %v812, %v848
    %v874 = vmul.f32 %v815, %v850
    %v875 = vmul.f32 %v818, %v852
    %v876 = vmul.f32 %v821, %v854
    %v877 = vmul.f32 %v824, %v856
    %v878 = vmul.f32 %v827, %v858
    %v879 = vperm.slane %v54, 2
    %880 = vrot.lane.b32.xlu0 %v49, 96
    %v881 = vpop.permute.xlu0 %880
    %882 = vrot.lane.b32.xlu0 %v50, 96
    %v883 = vpop.permute.xlu0 %882
    %884 = vrot.lane.b32.xlu0 %v51, 96
    %v885 = vpop.permute.xlu0 %884
    %886 = vrot.lane.b32.xlu0 %v52, 96
    %v887 = vpop.permute.xlu0 %886
    %v893 = vsel %vm56, %v869, 0
    %v896 = vsel %vm56, %v870, 0
    %v899 = vsel %vm56, %v871, 0
    %v902 = vsel %vm56, %v872, 0
    %v905 = vsel %vm56, %v873, 0
    %v908 = vsel %vm56, %v874, 0
    %v911 = vsel %vm56, %v875, 0
    %v914 = vsel %vm56, %v876, 0
    %v917 = vsel %vm56, %v877, 0
    %v920 = vsel %vm56, %v878, 0
    %922 = vmatpush.msra.mxu0 0.0
    %923 = vmatpush.msra.mxu0 0.0
    %924 = vmatpush.msra.mxu0 0.0
    %925 = vmatpush.msra.mxu0 0.0
    %926 = vmatpush.msra.mxu0 0.0
    %927 = vmatpush.msra.mxu0 0.0
    %928 = vmatpush.msra.mxu0 0.0
    %929 = vmatpush.msra.mxu0 0.0
    %930 = vmatpush.msra.mxu0 0.0
    %931 = vmatpush.msra.mxu0 0.0
    %932 = vmatpush.msra.mxu0 0.0
    %933 = vmatpush.msra.mxu0 0.0
    %934 = vmatpush.msra.mxu0 %v887
    %935 = vmatpush.msra.mxu0 %v885
    %936 = vmatpush.msra.mxu0 %v883
    %937 = vmatpush.msra.mxu0 %v881
    %938 = vmatmul.f32.gmra.mxu0 %v893
    %v939 = vpop.f32.mrf.mxu0
    %v940 = vadd.f32 %v879, %v939
    %941 = vmatmul.f32.gmra.mxu0 %v896
    %v942 = vpop.f32.mrf.mxu0
    %v943 = vadd.f32 %v879, %v942
    %944 = vmatmul.f32.gmra.mxu0 %v899
    %v945 = vpop.f32.mrf.mxu0
    %v946 = vadd.f32 %v879, %v945
    %947 = vmatmul.f32.gmra.mxu0 %v902
    %v948 = vpop.f32.mrf.mxu0
    %v949 = vadd.f32 %v879, %v948
    %950 = vmatmul.f32.gmra.mxu0 %v905
    %v951 = vpop.f32.mrf.mxu0
    %v952 = vadd.f32 %v879, %v951
    %953 = vmatmul.f32.gmra.mxu0 %v908
    %v954 = vpop.f32.mrf.mxu0
    %v955 = vadd.f32 %v879, %v954
    %956 = vmatmul.f32.gmra.mxu0 %v911
    %v957 = vpop.f32.mrf.mxu0
    %v958 = vadd.f32 %v879, %v957
    %959 = vmatmul.f32.gmra.mxu0 %v914
    %v960 = vpop.f32.mrf.mxu0
    %v961 = vadd.f32 %v879, %v960
    %962 = vmatmul.f32.gmra.mxu0 %v917
    %v963 = vpop.f32.mrf.mxu0
    %v964 = vadd.f32 %v879, %v963
    %965 = vmatmul.f32.gmra.mxu0 %v920
    %v966 = vpop.f32.mrf.mxu0
    %v967 = vadd.f32 %v879, %v966
    %968 = vdwg.mxu0
    %v969 = vpack.c.bf16 %v943, %v940
    %v970 = vpack.c.bf16 %v949, %v946
    %v971 = vpack.c.bf16 %v955, %v952
    %v972 = vpack.c.bf16 %v961, %v958
    %v973 = vpack.c.bf16 %v967, %v964
    %974 = vmatpush.bf16.msra.mxu0 0
    %975 = vmatpush.bf16.msra.mxu0 0
    %976 = vmatpush.bf16.msra.mxu0 0
    %977 = vmatpush.bf16.msra.mxu0 %v973
    %978 = vmatpush.bf16.msra.mxu0 %v972
    %979 = vmatpush.bf16.msra.mxu0 %v971
    %980 = vmatpush.bf16.msra.mxu0 %v970
    %981 = vmatpush.bf16.msra.mxu0 %v969
    %982 = vmatmul.bf16.gmra.mxu0 %v670
    %v983 = vpop.f32.mrf.mxu0
    %v984 = vadd.f32 %v22, %v983
    %v985 = vpop.f32.mrf.mxu0
    %v986 = vadd.f32 %v23, %v985
    %987 = vmatmul.bf16.gmra.mxu0 %v673
    %v988 = vpop.f32.mrf.mxu0
    %v989 = vadd.f32 %v24, %v988
    %v990 = vpop.f32.mrf.mxu0
    %991 = vdwg.mxu0
    %v992 = vsel %vm56, %v984, 0.0
    %v993 = vsel %vm56, %v986, 0.0
    %v994 = vadd.f32 %v992, %v993
    %v995 = vsel %vm56, %v989, 0.0
    %v996 = vadd.f32 %v994, %v995
    %v997 = vrot.slane %v996, 4
    %v998 = vadd.f32 %v996, %v997
    %v999 = vrot.slane %v998, 2
    %v1000 = vadd.f32 %v998, %v999
    %v1001 = vrot.slane %v1000, 1
    %v1002 = vadd.f32 %v1000, %v1001
    %v1003 = vrcp.pop 24.0
    %v1004 = vmul.f32 24.0, %v1003
    %v1005 = vsub.f32 1.0, %v1004
    %v1006 = vmul.f32 %v1003, %v1005
    %v1007 = vadd.f32 %v1003, %v1006
    %vm1008 = vweird.f32 %v1003
    %v1009 = vsel %vm1008, %v1003, %v1007
    %v1010 = vmul.f32 %v1002, %v1009
    %v1011 = vsub.f32 %v984, %v1010
    %v1012 = vsub.f32 %v986, %v1010
    %v1013 = vsub.f32 %v989, %v1010
    %v1014 = vmul.f32 %v1011, %v1011
    %v1015 = vmul.f32 %v1012, %v1012
    %v1016 = vmul.f32 %v1013, %v1013
    %v1017 = vsel %vm56, %v1014, 0.0
    %v1018 = vsel %vm56, %v1015, 0.0
    %v1019 = vadd.f32 %v1017, %v1018
    %v1020 = vsel %vm56, %v1016, 0.0
    %v1021 = vadd.f32 %v1019, %v1020
    %v1022 = vrot.slane %v1021, 4
    %v1023 = vadd.f32 %v1021, %v1022
    %v1024 = vrot.slane %v1023, 2
    %v1025 = vadd.f32 %v1023, %v1024
    %v1026 = vrot.slane %v1025, 1
    %v1027 = vadd.f32 %v1025, %v1026
    %v1028 = vmul.f32 %v1027, %v1009
    %v1029 = vadd.f32 %v1028, 1e-05
    %v1030 = vrsqrt.pop %v1029
    %v1031 = vmul.f32 %v1030, %v1029
    %v1032 = vmul.f32 %v1031, %v1030
    %v1033 = vmul.f32 0.5, %v1032
    %v1034 = vsub.f32 1.5, %v1033
    %v1035 = vmul.f32 %v1030, %v1034
    %vm1036 = vweird.f32 %v1029
    %vm1037 = vweird.f32 %v1030
    %vm1038 = vmor %vm1036, %vm1037
    %v1039 = vsel %vm1038, %v1030, %v1035
    %v1040 = vmul.f32 %v1011, %v1039
    %v1041 = vmul.f32 %v1012, %v1039
    %v1042 = vmul.f32 %v1013, %v1039
    %1044 = vrot.lane.b32.xlu0 %v879, 96
    %v1045 = vpop.permute.xlu0 %1044
    %v1047 = vmul.f32 %v1040, %v1045
    %v1048 = vmul.f32 %v1041, %v1045
    %v1049 = vmul.f32 %v1042, %v1045
    %1050 = vrot.lane.b32.xlu0 %v879, 64
    %v1051 = vpop.permute.xlu0 %1050
    %v1053 = vadd.f32 %v1047, %v1051
    %v1054 = vadd.f32 %v1048, %v1051
    %v1055 = vadd.f32 %v1049, %v1051
    %1056 = vst.msk [vmem:[#allocation2] sm:$0xff] %vm56, %v1053
    %1057 = vst.msk [vmem:[#allocation2 + $0x8] sm:$0xff] %vm56, %v1054
    %1058 = vst.msk [vmem:[#allocation2 + $0x10] sm:$0xff] %vm56, %v1055
    // Predicated region
    $region22: #{tpu_custom_call.1} parent=1 // pred_check
      _
    $region23: #{tpu_custom_call.1} parent=1 // pred_check_branch
      %1060 = sbr.rel (0) target = $region25
    $region24: #{tpu_custom_call.1} parent=1 // pred_region
      %1062 = vsyncadd [#allocation3], 0
      %s1063 = sshll.u32 [#allocation2], 4
      %s1064 = int_to_ptr.vmem [resolvable:$true] %s1063
      %s1065 = sshll.u32 %s5, 4
      %s1066 = int_to_ptr.hbm [resolvable:$true] %s1065
      %1071 = dma.vmem_to_hbm [thread:$0]  %s1064, 384, %s1066, [#allocation3], 128, 128, 8
    $region25: #{tpu_custom_call.1} parent=1 // pred_fallthru
      _
    // Predicated region
    $region26: #{tpu_custom_call.1} parent=1 // pred_check
      _
    $region27: #{tpu_custom_call.1} parent=1 // pred_check_branch
      %1073 = sbr.rel (0) target = $region29
    $region28: #{tpu_custom_call.1} parent=1 // pred_region
      %1075 = dma.done [#allocation3], 384
    $region29: #{tpu_custom_call.1} parent=1 // pred_fallthru
      _
    %1076 = vsyncpa [#allocation3], 1

</llo_original>
